<compile_context>
chip_gen: v7x
topology: tpu7x:2x2x1
jax: 0.10.0
libtpu: 0.0.40
codegen_flags: <defaults>
</compile_context>

<pallas_src>
import jax
import jax.numpy as jnp
from jax.experimental import pallas as pl
from jax.experimental.pallas import tpu as pltpu


def _elementwise_kernel(x_ref, o_ref):
    x = x_ref[...]
    # (x * 2 + 1) * 3 computed in the input dtype (matches torch semantics)
    o_ref[...] = (x * 2 + 1) * 3


def _sublane_multiple(dtype):
    # Packed-sublane tile height per dtype width: f32 -> 8, bf16/f16 -> 16,
    # int8/fp8 -> 32.
    itemsize = jnp.dtype(dtype).itemsize
    return {4: 8, 2: 16, 1: 32}.get(itemsize, 8)


# Widest 128-multiple divisor of n wins -> fewest rows, unmasked lane-dense vst.
_LANE_CANDIDATES = (32768, 16384, 8192, 4096, 2048, 1024, 512, 256, 128)

# Below this, pallas_call launch + single-step grid overhead dominates; XLA's
# fused elementwise is as fast or faster.
_SMALL_BYPASS_BYTES = 512 * 1024

# ~6 MiB blocks: large enough that the ~0.35 us/step grid overhead is <5% of a
# step on every generation; 2 arrays x 2 buffers x 6 MiB = 24 MiB footprint
# stays inside v7x's 64 MiB VMEM (and trivially inside v5e/v6e's 128 MiB).
_TARGET_BLOCK_BYTES = 6 * 1024 * 1024
_VMEM_LIMIT_BYTES = 40 * 1024 * 1024   # capped for v7x; fine on v5e/v6e too

# Aim for >= 4 grid steps so both v7x TensorCores get work and the pipeline
# always has a step i+1 to prefetch.
_MIN_GRID_STEPS = 4


def model_forward(x, *, force_pallas=False):
    """Elementwise (x*2+1)*3 via a Pallas TPU kernel.

    x: any-shape array (e.g. NCHW). Returns same shape/dtype.
    """
    orig_shape = x.shape
    dtype = x.dtype
    n = x.size
    itemsize = jnp.dtype(dtype).itemsize

    # ---- small-input bypass ------------------------------------------------
    if n == 0 or (not force_pallas and n * itemsize < _SMALL_BYPASS_BYTES):
        return (x * 2 + 1) * 3

    sub = _sublane_multiple(dtype)

    # ---- lane-dense 2D view; zero-copy whenever n is a multiple of 128 -----
    lanes = None
    for cand in _LANE_CANDIDATES:
        if n % cand == 0:
            lanes = cand
            break

    if lanes is not None:
        rows = n // lanes
        x2d = x.reshape(rows, lanes)          # metadata-only reshape, no pad
        padded = False
    else:
        # Ragged fallback (n % 128 != 0): pad up to a 128-lane slab.
        lanes = 128
        rows = -(-n // lanes)                 # ceil(n / lanes)
        x2d = jnp.pad(jnp.ravel(x), (0, rows * lanes - n)).reshape(rows, lanes)
        padded = True

    # ---- block rows: ~6 MiB per block AND >= 4 grid steps when possible ----
    bytes_per_row = lanes * itemsize
    tile_by_bytes = max(sub, (_TARGET_BLOCK_BYTES // bytes_per_row) // sub * sub)
    tile_by_steps = max(sub, (rows // _MIN_GRID_STEPS) // sub * sub)
    tile_rows = min(tile_by_bytes, tile_by_steps)
    if tile_rows >= rows:
        # Single block covering the full row extent (always a legal block shape).
        tile_rows = rows

    # Last block may overhang when rows % tile_rows != 0: Pallas masks the edge
    # stores, and the op is elementwise so OOB input rows never leak into
    # in-bounds outputs.
    grid = (pl.cdiv(rows, tile_rows),)

    out2d = pl.pallas_call(
        _elementwise_kernel,
        out_shape=jax.ShapeDtypeStruct((rows, lanes), dtype),
        grid=grid,
        in_specs=[pl.BlockSpec((tile_rows, lanes), lambda i: (i, 0))],
        out_specs=pl.BlockSpec((tile_rows, lanes), lambda i: (i, 0)),
        compiler_params=pltpu.CompilerParams(
            dimension_semantics=("parallel",),
            vmem_limit_bytes=_VMEM_LIMIT_BYTES,
        ),
    )(x2d)

    if padded:
        return out2d.reshape(-1)[:n].reshape(orig_shape)
    return out2d.reshape(orig_shape)


if __name__ == "__main__":
    key = jax.random.PRNGKey(0)

    # 1) Small NCHW input consistent with the module's elementwise forward.
    #    force_pallas=True so the kernel itself is exercised (the default
    #    wrapper would take the small-input bypass here).
    x = jax.random.normal(key, (2, 4, 16, 16), dtype=jnp.float32)
    y = model_forward(x, force_pallas=True)
    jax.block_until_ready(y)
    y_ref = (x * 2 + 1) * 3
    assert y.shape == x.shape and y.dtype == x.dtype
    assert jnp.allclose(y, y_ref, atol=1e-6, rtol=1e-6)

    # 2) Row count not divisible by the block rows -> overhanging last grid
    #    block with masked edge stores (zero-copy path, no padding).
    x_over = jax.random.normal(jax.random.PRNGKey(1), (20, 3, 128), dtype=jnp.float32)
    y_over = model_forward(x_over, force_pallas=True)
    jax.block_until_ready(y_over)
    assert jnp.allclose(y_over, (x_over * 2 + 1) * 3, atol=1e-6, rtol=1e-6)

    # 3) Ragged size (not a multiple of 128): exercises the padded fallback.
    x_rag = jax.random.normal(jax.random.PRNGKey(2), (3, 5, 7), dtype=jnp.float32)
    y_rag = model_forward(x_rag, force_pallas=True)
    jax.block_until_ready(y_rag)
    assert jnp.allclose(y_rag, (x_rag * 2 + 1) * 3, atol=1e-6, rtol=1e-6)

    # 4) bf16 input: exercises the 16-row sublane-packing path.
    x_bf16 = jax.random.normal(jax.random.PRNGKey(3), (2, 4, 16, 16)).astype(jnp.bfloat16)
    y_bf16 = model_forward(x_bf16, force_pallas=True)
    jax.block_until_ready(y_bf16)
    assert y_bf16.dtype == jnp.bfloat16
    assert jnp.allclose(y_bf16.astype(jnp.float32),
                        ((x_bf16 * 2 + 1) * 3).astype(jnp.float32),
                        atol=1e-2, rtol=1e-2)

    # 5) Default-path (small-input bypass) sanity check.
    y_small = model_forward(x)
    jax.block_until_ready(y_small)
    assert jnp.allclose(y_small, y_ref, atol=1e-6, rtol=1e-6)

    print("KERNEL_OK")
</pallas_src>

<mosaic_0001>
module attributes {stable_mosaic.version = 11 : i64} {
  func.func @_elementwise_kernel(%arg0: i32, %arg1: memref<1x2048xf32, #tpu.memory_space<vmem>>, %arg2: memref<1x2048xf32, #tpu.memory_space<vmem>>) attributes {dimension_semantics = [#tpu.dimension_semantics<parallel>], iteration_bounds = array<i64: 1>, scalar_prefetch = 0 : i64, scratch_operands = 0 : i64, tpu.core_type = #tpu.core_type<tc>, window_params = [{transform_indices = @transform_0, window_bounds = array<i64: 1, 2048>}, {transform_indices = @transform_1, window_bounds = array<i64: 1, 2048>}]} {
    %c0 = arith.constant 0 : index
    %c0_0 = arith.constant 0 : index
    %0 = vector.load %arg1[%c0, %c0_0] : memref<1x2048xf32, #tpu.memory_space<vmem>>, vector<1x2048xf32>
    %cst = arith.constant 2.000000e+00 : f32
    %1 = vector.broadcast %cst : f32 to vector<1x2048xf32>
    %2 = arith.mulf %0, %1 : vector<1x2048xf32>
    %cst_1 = arith.constant 1.000000e+00 : f32
    %3 = vector.broadcast %cst_1 : f32 to vector<1x2048xf32>
    %4 = arith.addf %2, %3 : vector<1x2048xf32>
    %cst_2 = arith.constant 3.000000e+00 : f32
    %5 = vector.broadcast %cst_2 : f32 to vector<1x2048xf32>
    %6 = arith.mulf %4, %5 : vector<1x2048xf32>
    %c0_3 = arith.constant 0 : index
    %c0_4 = arith.constant 0 : index
    %7 = vector.load %arg2[%c0_3, %c0_4] : memref<1x2048xf32, #tpu.memory_space<vmem>>, vector<1x2048xf32>
    tpu.vector_store %arg2[%c0_3, %c0_4], %6 {strides = array<i32>} : memref<1x2048xf32, #tpu.memory_space<vmem>>, vector<1x2048xf32>,
    return
  }
  func.func @transform_0(%arg0: i32) -> (i32, i32) {
    %c0_i32 = arith.constant 0 : i32
    %c0_i32_0 = arith.constant 0 : i32
    return %arg0, %c0_i32 : i32, i32
  }
  func.func @transform_1(%arg0: i32) -> (i32, i32) {
    %c0_i32 = arith.constant 0 : i32
    %c0_i32_0 = arith.constant 0 : i32
    return %arg0, %c0_i32 : i32, i32
  }
}

</mosaic_0001>

<llo_original>
// kernel: tpu_custom_call.1
$region0: #{tpu_custom_call.1}
  #allocation0 [shape = 'u32[]', space=smem, size = 0x4, offset = 0x4, fixed_abs, tag = 'smem constant byte address 0x4 - core index']
  #allocation1 [shape = 'u32[144,128]{1,0:T(1,128)}', space=vmem, size = 0x12000, scoped, tag = 'internal scratch']
  %s0 = inlined_call_operand.hbm [shape: f32[1,2048], index: 0, kind: input, shape index: {}]
  %s1 = inlined_call_operand.hbm [shape: f32[1,2048], index: 1, kind: output, shape index: {}]
  %s2 = sld [smem:[#allocation0]]
  $region18: #{tpu_custom_call.1} parent=0
    _
  %s4 = ssub.s32 1, %s2
  %s5 = scalar_select 0, %s4, %s2
  $region1: #{tpu_custom_call.1} parent=0
    #allocation2 [shape = 'u8[8192]{0}', space=vmem, size = 0x2000, scoped, tag = 'input window, operand 0, single buffered']
    #allocation3 [shape = 's32[1]{0}', space=sflag, size = 0x4, scoped, tag = 'scoped memory for tpu_custom_call.1']
    #allocation4 [shape = 's32[1]{0}', space=sflag, size = 0x4, scoped, tag = 'scoped memory for tpu_custom_call.1']
    #allocation5 [shape = 'u8[8192]{0}', space=vmem, size = 0x2000, scoped, tag = 'output window, operand 0, single buffered']
    %6 = vsyncpa [#allocation3], 0
    %7 = vsyncpa [#allocation4], 0
    // Predicated region
    $region2: #{tpu_custom_call.1} parent=1 // pred_check
      _
    $region3: #{tpu_custom_call.1} parent=1 // pred_check_branch
      %9 = sbr.rel (0) target = $region5
    $region4: #{tpu_custom_call.1} parent=1 // pred_region
      %s11 = ssub.s32 256, 256
      %12 = vsyncadd [#allocation3], %s11
      %s14 = sshll.u32 [#allocation2], 4
      %s15 = int_to_ptr.vmem [resolvable:$true] %s14
      %17 = dma.hbm_to_vmem [thread:$0]  %s0, 256, %s15, [#allocation3]
    $region5: #{tpu_custom_call.1} parent=1 // pred_fallthru
      _
    // Predicated region
    $region6: #{tpu_custom_call.1} parent=1 // pred_check
      _
    $region7: #{tpu_custom_call.1} parent=1 // pred_check_branch
      %19 = sbr.rel (0) target = $region9
    $region8: #{tpu_custom_call.1} parent=1 // pred_region
      %20 = dma.done [#allocation3], 256
    $region9: #{tpu_custom_call.1} parent=1 // pred_fallthru
      _
    %v21 = vld [vmem:[#allocation2] sm:$0xff]
    %v22 = vld [vmem:[#allocation2 + $0x8] sm:$0xff]
    %v23 = vmul.f32 %v21, 2.0
    %v24 = vmul.f32 %v22, 2.0
    %v25 = vadd.f32 %v23, 1.0
    %v26 = vadd.f32 %v24, 1.0
    %v27 = vmul.f32 %v25, 3.0
    %v28 = vmul.f32 %v26, 3.0
    %29 = vst [vmem:[#allocation5] sm:$0xff] %v27
    %30 = vst [vmem:[#allocation5 + $0x8] sm:$0xff] %v28
    // Predicated region
    $region10: #{tpu_custom_call.1} parent=1 // pred_check
      _
    $region11: #{tpu_custom_call.1} parent=1 // pred_check_branch
      %32 = sbr.rel (0) target = $region13
    $region12: #{tpu_custom_call.1} parent=1 // pred_region
      %s34 = ssub.s32 256, 256
      %35 = vsyncadd [#allocation4], %s34
      %s37 = sshll.u32 [#allocation5], 4
      %s38 = int_to_ptr.vmem [resolvable:$true] %s37
      %40 = dma.vmem_to_hbm [thread:$0]  %s38, 256, %s1, [#allocation4]
    $region13: #{tpu_custom_call.1} parent=1 // pred_fallthru
      _
    // Predicated region
    $region14: #{tpu_custom_call.1} parent=1 // pred_check
      _
    $region15: #{tpu_custom_call.1} parent=1 // pred_check_branch
      %42 = sbr.rel (0) target = $region17
    $region16: #{tpu_custom_call.1} parent=1 // pred_region
      %43 = dma.done [#allocation4], 256
    $region17: #{tpu_custom_call.1} parent=1 // pred_fallthru
      _
    %44 = vsyncpa [#allocation3], 1
    %45 = vsyncpa [#allocation4], 1

</llo_original>
